<compile_context>
chip_gen: v5e
topology: v5e:2x2
jax: 0.10.0
libtpu: 0.0.40
codegen_flags: <defaults>
</compile_context>

<pallas_src>
import functools

import jax
import jax.numpy as jnp
from jax import lax
from jax.experimental import pallas as pl
from jax.experimental.pallas import tpu as pltpu

LANE = 128
SUBLANE = 8


def _round_up(n, m):
    return ((n + m - 1) // m) * m


def _fnn_fused_kernel(x_ref, w_ref, b_ref, o_ref, *, n_layers):
    """Whole MLP in one gridless invocation (everything VMEM-resident).

    x_ref : (2*Bp, Dp)  f32   real rows then imag rows (lane/sublane padded)
    w_ref : (L, Dp, Dp) bf16  stacked zero-padded weights, [in, out] layout
    b_ref : (L, 1, Dp)  f32   stacked zero-padded biases
    o_ref : (2*Bp, Dp)  f32
    """
    h = x_ref[...]                                        # f32 activations
    for l in range(n_layers):                             # static unroll (tiny L)
        w = w_ref[l]                                      # (Dp, Dp) bf16
        b = b_ref[l]                                      # (1, Dp)  f32 (one broadcast)
        # bf16 MXU matmul with f32 accumulation; bias add / tanh stay f32.
        h = jnp.dot(h.astype(jnp.bfloat16), w,
                    preferred_element_type=jnp.float32) + b
        if l < n_layers - 1:
            h = jnp.tanh(h)          # nn.Tanh(); tanh(0)=0 keeps zero-padding inert
    o_ref[...] = h.astype(o_ref.dtype)


def init_fnn_params(key, in_dim, out_dim, layer_sizes):
    """Init matching PyTorch nn.Linear default (uniform +-1/sqrt(fan_in)).

    Weights stored as [in_features, out_features] so the kernel computes
    y = x @ W + b directly on the MXU.
    """
    sizes = [in_dim] + list(layer_sizes) + [out_dim]
    params = []
    for k in range(len(sizes) - 1):
        key, kw, kb = jax.random.split(key, 3)
        bound = 1.0 / (sizes[k] ** 0.5)
        w = jax.random.uniform(kw, (sizes[k], sizes[k + 1]), jnp.float32,
                               minval=-bound, maxval=bound)
        b = jax.random.uniform(kb, (sizes[k + 1],), jnp.float32,
                               minval=-bound, maxval=bound)
        params.append((w, b))
    scale = jnp.float32(0.001)   # dead in forward(); kept for __init__ parity
    return params, scale


def pack_params(params, lane=LANE):
    """Zero-pad every feature dim to one common Dp (mult of 128) and stack.

    Padded weight rows/cols and bias entries are zero, so padded lanes stay
    exactly zero through tanh (tanh(0)=0) and every subsequent layer.
    Weights are cast to bf16 once here (outside the hot path).
    """
    dims = [params[0][0].shape[0]] + [w.shape[1] for w, _ in params]
    dp = _round_up(max(dims), lane)
    ws, bs = [], []
    for w, b in params:
        din, dout = w.shape
        ws.append(jnp.pad(w, ((0, dp - din), (0, dp - dout))))
        bs.append(jnp.pad(b.reshape(1, -1), ((0, 0), (0, dp - dout))))
    w_stack = jnp.stack(ws).astype(jnp.bfloat16)   # (L, Dp, Dp)
    b_stack = jnp.stack(bs)                        # (L, 1, Dp) f32
    return w_stack, b_stack


def fnn_forward(x_complex, w_stack, b_stack, *, out_dim):
    """x_complex: complex64 [B, in_dim] -> complex64 [B, out_dim]."""
    B, in_dim = x_complex.shape
    n_layers, dp, _ = w_stack.shape
    bp = _round_up(B, SUBLANE)     # imag half / output start on a sublane boundary

    xr = jnp.real(x_complex).astype(jnp.float32)
    xi = jnp.imag(x_complex).astype(jnp.float32)
    pad = ((0, bp - B), (0, dp - in_dim))
    # one fused pad/pad/concat producing a single lane-dense (2*Bp, Dp) slab
    x_slab = jnp.concatenate([jnp.pad(xr, pad), jnp.pad(xi, pad)], axis=0)

    vmem = pl.BlockSpec(memory_space=pltpu.MemorySpace.VMEM)
    kernel = functools.partial(_fnn_fused_kernel, n_layers=n_layers)

    flops = 2 * (2 * bp) * n_layers * dp * dp
    transc = (2 * bp) * (n_layers - 1) * dp
    bytes_accessed = (4 * 2 * (2 * bp) * dp          # f32 in + out slabs
                      + 2 * n_layers * dp * dp       # bf16 weights
                      + 4 * n_layers * dp)           # f32 biases

    out = pl.pallas_call(
        kernel,
        out_shape=jax.ShapeDtypeStruct((2 * bp, dp), jnp.float32),
        in_specs=[vmem, vmem, vmem],
        out_specs=vmem,
        cost_estimate=pl.CostEstimate(flops=flops, transcendentals=transc,
                                      bytes_accessed=bytes_accessed),
    )(x_slab, w_stack, b_stack)

    out_r = out[:B, :out_dim]
    out_i = out[bp:bp + B, :out_dim]
    return lax.complex(out_r, out_i)     # single fused recombination


def fnn_reference(x_complex, params, *, bf16_matmul):
    """Pure-JAX reference mirroring the PyTorch forward loop (unpadded).

    bf16_matmul=True reproduces the kernel's precision path (bf16 MXU inputs,
    f32 accumulation); False is the exact-f32 PyTorch-style reference.
    """
    xr = jnp.real(x_complex).astype(jnp.float32)
    xi = jnp.imag(x_complex).astype(jnp.float32)
    n_layers = len(params)
    for idx, (w, b) in enumerate(params):
        if bf16_matmul:
            wm = w.astype(jnp.bfloat16)
            xr2 = jnp.dot(xr.astype(jnp.bfloat16), wm,
                          preferred_element_type=jnp.float32) + b
            xi2 = jnp.dot(xi.astype(jnp.bfloat16), wm,
                          preferred_element_type=jnp.float32) + b
        else:
            xr2 = xr @ w + b
            xi2 = xi @ w + b
        if idx < n_layers - 1:
            xr2, xi2 = jnp.tanh(xr2), jnp.tanh(xi2)
        xr, xi = xr2, xi2
    return lax.complex(xr, xi)


if __name__ == "__main__":
    key = jax.random.PRNGKey(0)
    kx_r, kx_i, kp = jax.random.split(key, 3)

    # small shapes consistent with FNN(in_dim, out_dim, act, layer_sizes)
    batch, in_dim, out_dim = 8, 32, 16
    layer_sizes = [64, 64, 64]

    x_real = jax.random.normal(kx_r, (batch, in_dim), jnp.float32)
    x_imag = jax.random.normal(kx_i, (batch, in_dim), jnp.float32)
    x = lax.complex(x_real, x_imag)                     # complex64 [B, in_dim]

    params, _scale = init_fnn_params(kp, in_dim, out_dim, layer_sizes)
    w_stack, b_stack = pack_params(params)              # pad/cast once, outside hot path

    fwd = jax.jit(fnn_forward, static_argnames=("out_dim",))
    out = fwd(x, w_stack, b_stack, out_dim=out_dim)
    out = jax.block_until_ready(out)

    assert out.shape == (batch, out_dim) and out.dtype == jnp.complex64

    # tight check vs a reference on the same precision path (bf16 MXU, f32 acc)
    ref_matched = fnn_reference(x, params, bf16_matmul=True)
    assert jnp.allclose(out, ref_matched, atol=1e-3, rtol=1e-3), \
        "mismatch vs matched-precision reference"

    # loose check vs the exact f32 reference (bounds the bf16-weight approximation)
    ref_f32 = fnn_reference(x, params, bf16_matmul=False)
    assert jnp.allclose(out, ref_f32, atol=5e-2, rtol=5e-2), \
        "mismatch vs f32 reference"

    print("KERNEL_OK")
</pallas_src>

<mosaic_0001>
module attributes {stable_mosaic.version = 11 : i64} {
  func.func @_fnn_fused_kernel(%arg0: memref<16x128xf32, #tpu.memory_space<vmem>>, %arg1: memref<4x128x128xbf16, #tpu.memory_space<vmem>>, %arg2: memref<4x1x128xf32, #tpu.memory_space<vmem>>, %arg3: memref<16x128xf32, #tpu.memory_space<vmem>>) attributes {dimension_semantics = [], scalar_prefetch = 0 : i64, scratch_operands = 0 : i64, tpu.core_type = #tpu.core_type<tc>} {
    %c0 = arith.constant 0 : index
    %c0_0 = arith.constant 0 : index
    %0 = vector.load %arg0[%c0, %c0_0] : memref<16x128xf32, #tpu.memory_space<vmem>>, vector<16x128xf32>
    %c0_1 = arith.constant 0 : index
    %c0_2 = arith.constant 0 : index
    %c0_3 = arith.constant 0 : index
    %1 = vector.load %arg1[%c0_1, %c0_2, %c0_3] : memref<4x128x128xbf16, #tpu.memory_space<vmem>>, vector<1x128x128xbf16>
    %2 = vector.shape_cast %1 : vector<1x128x128xbf16> to vector<128x128xbf16>
    %c0_4 = arith.constant 0 : index
    %c0_5 = arith.constant 0 : index
    %c0_6 = arith.constant 0 : index
    %3 = vector.load %arg2[%c0_4, %c0_5, %c0_6] : memref<4x1x128xf32, #tpu.memory_space<vmem>>, vector<1x1x128xf32>
    %4 = vector.shape_cast %3 : vector<1x1x128xf32> to vector<1x128xf32>
    %5 = arith.truncf %0 : vector<16x128xf32> to vector<16x128xbf16>
    %cst = arith.constant dense<0.000000e+00> : vector<16x128xf32>
    %6 = tpu.matmul %5, %2, %cst {dimension_numbers = #tpu.dot_dimension_numbers<[1], [0], [0], [1], [0, 0, 1, 1], [], []>} : vector<16x128xbf16>, vector<128x128xbf16>, vector<16x128xf32> -> vector<16x128xf32>
    %7 = vector.broadcast %4 : vector<1x128xf32> to vector<16x128xf32>
    %8 = arith.addf %6, %7 : vector<16x128xf32>
    %9 = math.tanh %8 : vector<16x128xf32>
    %c1 = arith.constant 1 : index
    %c0_7 = arith.constant 0 : index
    %c0_8 = arith.constant 0 : index
    %10 = vector.load %arg1[%c1, %c0_7, %c0_8] : memref<4x128x128xbf16, #tpu.memory_space<vmem>>, vector<1x128x128xbf16>
    %11 = vector.shape_cast %10 : vector<1x128x128xbf16> to vector<128x128xbf16>
    %c1_9 = arith.constant 1 : index
    %c0_10 = arith.constant 0 : index
    %c0_11 = arith.constant 0 : index
    %12 = vector.load %arg2[%c1_9, %c0_10, %c0_11] : memref<4x1x128xf32, #tpu.memory_space<vmem>>, vector<1x1x128xf32>
    %13 = vector.shape_cast %12 : vector<1x1x128xf32> to vector<1x128xf32>
    %14 = arith.truncf %9 : vector<16x128xf32> to vector<16x128xbf16>
    %cst_12 = arith.constant dense<0.000000e+00> : vector<16x128xf32>
    %15 = tpu.matmul %14, %11, %cst_12 {dimension_numbers = #tpu.dot_dimension_numbers<[1], [0], [0], [1], [0, 0, 1, 1], [], []>} : vector<16x128xbf16>, vector<128x128xbf16>, vector<16x128xf32> -> vector<16x128xf32>
    %16 = vector.broadcast %13 : vector<1x128xf32> to vector<16x128xf32>
    %17 = arith.addf %15, %16 : vector<16x128xf32>
    %18 = math.tanh %17 : vector<16x128xf32>
    %c2 = arith.constant 2 : index
    %c0_13 = arith.constant 0 : index
    %c0_14 = arith.constant 0 : index
    %19 = vector.load %arg1[%c2, %c0_13, %c0_14] : memref<4x128x128xbf16, #tpu.memory_space<vmem>>, vector<1x128x128xbf16>
    %20 = vector.shape_cast %19 : vector<1x128x128xbf16> to vector<128x128xbf16>
    %c2_15 = arith.constant 2 : index
    %c0_16 = arith.constant 0 : index
    %c0_17 = arith.constant 0 : index
    %21 = vector.load %arg2[%c2_15, %c0_16, %c0_17] : memref<4x1x128xf32, #tpu.memory_space<vmem>>, vector<1x1x128xf32>
    %22 = vector.shape_cast %21 : vector<1x1x128xf32> to vector<1x128xf32>
    %23 = arith.truncf %18 : vector<16x128xf32> to vector<16x128xbf16>
    %cst_18 = arith.constant dense<0.000000e+00> : vector<16x128xf32>
    %24 = tpu.matmul %23, %20, %cst_18 {dimension_numbers = #tpu.dot_dimension_numbers<[1], [0], [0], [1], [0, 0, 1, 1], [], []>} : vector<16x128xbf16>, vector<128x128xbf16>, vector<16x128xf32> -> vector<16x128xf32>
    %25 = vector.broadcast %22 : vector<1x128xf32> to vector<16x128xf32>
    %26 = arith.addf %24, %25 : vector<16x128xf32>
    %27 = math.tanh %26 : vector<16x128xf32>
    %c3 = arith.constant 3 : index
    %c0_19 = arith.constant 0 : index
    %c0_20 = arith.constant 0 : index
    %28 = vector.load %arg1[%c3, %c0_19, %c0_20] : memref<4x128x128xbf16, #tpu.memory_space<vmem>>, vector<1x128x128xbf16>
    %29 = vector.shape_cast %28 : vector<1x128x128xbf16> to vector<128x128xbf16>
    %c3_21 = arith.constant 3 : index
    %c0_22 = arith.constant 0 : index
    %c0_23 = arith.constant 0 : index
    %30 = vector.load %arg2[%c3_21, %c0_22, %c0_23] : memref<4x1x128xf32, #tpu.memory_space<vmem>>, vector<1x1x128xf32>
    %31 = vector.shape_cast %30 : vector<1x1x128xf32> to vector<1x128xf32>
    %32 = arith.truncf %27 : vector<16x128xf32> to vector<16x128xbf16>
    %cst_24 = arith.constant dense<0.000000e+00> : vector<16x128xf32>
    %33 = tpu.matmul %32, %29, %cst_24 {dimension_numbers = #tpu.dot_dimension_numbers<[1], [0], [0], [1], [0, 0, 1, 1], [], []>} : vector<16x128xbf16>, vector<128x128xbf16>, vector<16x128xf32> -> vector<16x128xf32>
    %34 = vector.broadcast %31 : vector<1x128xf32> to vector<16x128xf32>
    %35 = arith.addf %33, %34 : vector<16x128xf32>
    %c0_25 = arith.constant 0 : index
    %c0_26 = arith.constant 0 : index
    %36 = vector.load %arg3[%c0_25, %c0_26] : memref<16x128xf32, #tpu.memory_space<vmem>>, vector<16x128xf32>
    tpu.vector_store %arg3[%c0_25, %c0_26], %35 {strides = array<i32>} : memref<16x128xf32, #tpu.memory_space<vmem>>, vector<16x128xf32>,
    return
  }
}

</mosaic_0001>

<llo_original>
// kernel: custom-call.1
$region0: #{custom-call.1}
  %s0 = inlined_call_operand.hbm [shape: c64[8,32], index: 0, kind: input, shape index: {}]
  %s1 = inlined_call_operand.vmem [shape: f32[8,32], index: 1, kind: output, shape index: {}]
  %s2 = scalar_lea.hbm %s0, 8
  $region1: #{custom-call.1} parent=0
    #allocation0 [shape = 's32[1]{0}', space=sflag, size = 0x4, scoped, tag = 'scoped memory for custom-call.1']
    %3 = vsyncpa [#allocation0], 0
    %s5 = sshll.u32 %s2, 4
    %s6 = int_to_ptr.hbm [resolvable:$true] %s5
    %s7 = sshll.u32 %s1, 4
    %s8 = int_to_ptr.vmem [resolvable:$true] %s7
    %10 = dma.hbm_to_vmem [thread:$0]  %s6, 128, %s8, [#allocation0]
    %12 = dma.done [#allocation0], 128
    %13 = vsyncpa [#allocation0], 1

// kernel: custom-call
$region0: #{custom-call}
  %s0 = inlined_call_operand.hbm [shape: c64[8,32], index: 0, kind: input, shape index: {}]
  %s1 = inlined_call_operand.vmem [shape: f32[8,32], index: 1, kind: output, shape index: {}]
  $region1: #{custom-call} parent=0
    #allocation0 [shape = 's32[1]{0}', space=sflag, size = 0x4, scoped, tag = 'scoped memory for custom-call']
    %2 = vsyncpa [#allocation0], 0
    %s4 = sshll.u32 %s0, 4
    %s5 = int_to_ptr.hbm [resolvable:$true] %s4
    %s6 = sshll.u32 %s1, 4
    %s7 = int_to_ptr.vmem [resolvable:$true] %s6
    %9 = dma.hbm_to_vmem [thread:$0]  %s5, 128, %s7, [#allocation0]
    %11 = dma.done [#allocation0], 128
    %12 = vsyncpa [#allocation0], 1

// kernel: custom-call.2
$region0: #{custom-call.2}
  %s0 = inlined_call_operand.vmem [shape: f32[8,16], index: 0, kind: input, shape index: {}]
  %s1 = inlined_call_operand.vmem [shape: f32[8,16], index: 1, kind: input, shape index: {}]
  %s2 = inlined_call_operand.hbm [shape: c64[8,16], index: 2, kind: output, shape index: {}]
  %s3 = scalar_lea.hbm %s2, 8
  $region1: #{custom-call.2} parent=0
    #allocation0 [shape = 's32[1]{0}', space=sflag, size = 0x4, scoped, tag = 'scoped memory for custom-call.2']
    %4 = vsyncpa [#allocation0], 0
    %s6 = sshll.u32 %s0, 4
    %s7 = int_to_ptr.vmem [resolvable:$true] %s6
    %s8 = sshll.u32 %s2, 4
    %s9 = int_to_ptr.hbm [resolvable:$true] %s8
    %11 = dma.vmem_to_hbm [thread:$0]  %s7, 128, %s9, [#allocation0]
    %13 = dma.done [#allocation0], 128
    %14 = vsyncpa [#allocation0], 1
  $region2: #{custom-call.2} parent=0
    #allocation1 [shape = 's32[1]{0}', space=sflag, size = 0x4, scoped, tag = 'scoped memory for custom-call.2']
    %15 = vsyncpa [#allocation1], 0
    %s17 = sshll.u32 %s1, 4
    %s18 = int_to_ptr.vmem [resolvable:$true] %s17
    %s19 = sshll.u32 %s3, 4
    %s20 = int_to_ptr.hbm [resolvable:$true] %s19
    %22 = dma.vmem_to_hbm [thread:$0]  %s18, 128, %s20, [#allocation1]
    %24 = dma.done [#allocation1], 128
    %25 = vsyncpa [#allocation1], 1

// kernel: fnn_forward.1
$region0: #{fnn_forward.1}
  #allocation0 [shape = 'u32[]', space=smem, size = 0x4, offset = 0x4, fixed_abs, tag = 'smem constant byte address 0x4 - core index']
  #allocation1 [shape = 'u32[72,128]{1,0:T(1,128)}', space=vmem, size = 0x9000, scoped, tag = 'internal scratch']
  %s0 = inlined_call_operand.vmem [shape: f32[16,128], index: 0, kind: input, shape index: {}]
  %s1 = inlined_call_operand.hbm [shape: bf16[4,128,128], index: 1, kind: input, shape index: {}]
  %s2 = inlined_call_operand.vmem [shape: f32[4,1,128], index: 2, kind: input, shape index: {}]
  %s3 = inlined_call_operand.vmem [shape: f32[16,128], index: 3, kind: output, shape index: {}]
  %s4 = sld [smem:[#allocation0]]
  $region26: #{fnn_forward.1} parent=0
    _
  %s6 = ssub.s32 1, %s4
  %s7 = scalar_select 0, %s6, %s4
  $region1: #{fnn_forward.1} parent=0
    #allocation2 [shape = 'u8[131072]{0}', space=vmem, size = 0x20000, scoped, tag = 'input window, operand 1, single buffered']
    #allocation3 [shape = 's32[1]{0}', space=sflag, size = 0x4, scoped, tag = 'scoped memory for fnn_forward.1']
    %8 = vsyncpa [#allocation3], 0
    // Predicated region
    $region2: #{fnn_forward.1} parent=1 // pred_check
      _
    $region3: #{fnn_forward.1} parent=1 // pred_check_branch
      %10 = sbr.rel (0) target = $region5
    $region4: #{fnn_forward.1} parent=1 // pred_region
      _
    $region5: #{fnn_forward.1} parent=1 // pred_fallthru
      _
    // Predicated region
    $region6: #{fnn_forward.1} parent=1 // pred_check
      _
    $region7: #{fnn_forward.1} parent=1 // pred_check_branch
      %12 = sbr.rel (0) target = $region9
    $region8: #{fnn_forward.1} parent=1 // pred_region
      %14 = vsyncadd [#allocation3], 0
      %s15 = sshll.u32 %s1, 4
      %s16 = int_to_ptr.hbm [resolvable:$true] %s15
      %s17 = sshll.u32 [#allocation2], 4
      %s18 = int_to_ptr.vmem [resolvable:$true] %s17
      %23 = dma.hbm_to_vmem [thread:$0]  %s16, 4096, %s18, [#allocation3], 64, 64, 4
    $region9: #{fnn_forward.1} parent=1 // pred_fallthru
      _
    // Predicated region
    $region10: #{fnn_forward.1} parent=1 // pred_check
      _
    $region11: #{fnn_forward.1} parent=1 // pred_check_branch
      %25 = sbr.rel (0) target = $region13
    $region12: #{fnn_forward.1} parent=1 // pred_region
      _
    $region13: #{fnn_forward.1} parent=1 // pred_fallthru
      _
    // Predicated region
    $region14: #{fnn_forward.1} parent=1 // pred_check
      _
    $region15: #{fnn_forward.1} parent=1 // pred_check_branch
      %27 = sbr.rel (0) target = $region17
    $region16: #{fnn_forward.1} parent=1 // pred_region
      %29 = dma.done [#allocation3], 4096
    $region17: #{fnn_forward.1} parent=1 // pred_fallthru
      _
    %v30 = vld [vmem:[%s0] sm:$0xff]
    %v31 = vld [vmem:[%s0 + $0x8] sm:$0xff]
    %v32 = vld [vmem:[#allocation2] sm:$0xf]
    %v33 = vld [vmem:[#allocation2 + $0x4] sm:$0xf]
    %v34 = vld [vmem:[#allocation2 + $0x8] sm:$0xf]
    %v35 = vld [vmem:[#allocation2 + $0xc] sm:$0xf]
    %v36 = vld [vmem:[#allocation2 + $0x10] sm:$0xf]
    %v37 = vld [vmem:[#allocation2 + $0x14] sm:$0xf]
    %v38 = vld [vmem:[#allocation2 + $0x18] sm:$0xf]
    %v39 = vld [vmem:[#allocation2 + $0x1c] sm:$0xf]
    %v40 = vld [vmem:[#allocation2 + $0x20] sm:$0xf]
    %v41 = vld [vmem:[#allocation2 + $0x24] sm:$0xf]
    %v42 = vld [vmem:[#allocation2 + $0x28] sm:$0xf]
    %v43 = vld [vmem:[#allocation2 + $0x2c] sm:$0xf]
    %v44 = vld [vmem:[#allocation2 + $0x30] sm:$0xf]
    %v45 = vld [vmem:[#allocation2 + $0x34] sm:$0xf]
    %v46 = vld [vmem:[#allocation2 + $0x38] sm:$0xf]
    %v47 = vld [vmem:[#allocation2 + $0x3c] sm:$0xf]
    %v48 = vld [vmem:[%s2] sm:$0x1]
    %v49 = vpack.c.bf16 %v31, %v30
    %v51 = vperm.slane %v48, 0
    %v69 = vunpack.c.l.b16 %v32
    %v70 = vunpack.c.l.b16 %v33
    %v71 = vunpack.c.l.b16 %v34
    %v72 = vunpack.c.l.b16 %v35
    %v73 = vunpack.c.l.b16 %v36
    %v74 = vunpack.c.l.b16 %v37
    %v75 = vunpack.c.l.b16 %v38
    %v76 = vunpack.c.l.b16 %v39
    %v77 = vunpack.c.l.b16 %v40
    %v78 = vunpack.c.l.b16 %v41
    %v79 = vunpack.c.l.b16 %v42
    %v80 = vunpack.c.l.b16 %v43
    %v81 = vunpack.c.l.b16 %v44
    %v82 = vunpack.c.l.b16 %v45
    %v83 = vunpack.c.l.b16 %v46
    %v84 = vunpack.c.l.b16 %v47
    %v85 = vpack.c.b16 %v70, %v69
    %v86 = vpack.c.b16 %v72, %v71
    %v87 = vpack.c.b16 %v74, %v73
    %v88 = vpack.c.b16 %v76, %v75
    %v89 = vpack.c.b16 %v78, %v77
    %v90 = vpack.c.b16 %v80, %v79
    %v91 = vpack.c.b16 %v82, %v81
    %v92 = vpack.c.b16 %v84, %v83
    %101 = vmatpush.bf16.msra.mxu0 %v92
    %102 = vmatpush.bf16.msra.mxu0 %v91
    %103 = vmatpush.bf16.msra.mxu0 %v90
    %104 = vmatpush.bf16.msra.mxu0 %v89
    %105 = vmatpush.bf16.msra.mxu0 %v88
    %106 = vmatpush.bf16.msra.mxu0 %v87
    %107 = vmatpush.bf16.msra.mxu0 %v86
    %108 = vmatpush.bf16.msra.mxu0 %v85
    %109 = vmatmul.bf16.gmra.mxu0 %v49
    %v110 = vpop.f32.mrf.mxu0
    %v111 = vadd.f32 %v51, %v110
    %v112 = vpop.f32.mrf.mxu0
    %v113 = vadd.f32 %v51, %v112
    %114 = vdwg.mxu0
    %v115 = vtanh.pop %v111
    %v116 = vtanh.pop %v113
    %s117 = scalar_lea.vmem [#allocation2], 64
    %v118 = vld [vmem:[%s117] sm:$0xf]
    %v119 = vld [vmem:[%s117 + $0x4] sm:$0xf]
    %v120 = vld [vmem:[%s117 + $0x8] sm:$0xf]
    %v121 = vld [vmem:[%s117 + $0xc] sm:$0xf]
    %v122 = vld [vmem:[%s117 + $0x10] sm:$0xf]
    %v123 = vld [vmem:[%s117 + $0x14] sm:$0xf]
    %v124 = vld [vmem:[%s117 + $0x18] sm:$0xf]
    %v125 = vld [vmem:[%s117 + $0x1c] sm:$0xf]
    %v126 = vld [vmem:[%s117 + $0x20] sm:$0xf]
    %v127 = vld [vmem:[%s117 + $0x24] sm:$0xf]
    %v128 = vld [vmem:[%s117 + $0x28] sm:$0xf]
    %v129 = vld [vmem:[%s117 + $0x2c] sm:$0xf]
    %v130 = vld [vmem:[%s117 + $0x30] sm:$0xf]
    %v131 = vld [vmem:[%s117 + $0x34] sm:$0xf]
    %v132 = vld [vmem:[%s117 + $0x38] sm:$0xf]
    %v133 = vld [vmem:[%s117 + $0x3c] sm:$0xf]
    %s134 = scalar_lea.vmem %s2, 1
    %v135 = vld [vmem:[%s134] sm:$0x1]
    %v136 = vpack.c.bf16 %v116, %v115
    %v138 = vperm.slane %v135, 0
    %v156 = vunpack.c.l.b16 %v118
    %v157 = vunpack.c.l.b16 %v119
    %v158 = vunpack.c.l.b16 %v120
    %v159 = vunpack.c.l.b16 %v121
    %v160 = vunpack.c.l.b16 %v122
    %v161 = vunpack.c.l.b16 %v123
    %v162 = vunpack.c.l.b16 %v124
    %v163 = vunpack.c.l.b16 %v125
    %v164 = vunpack.c.l.b16 %v126
    %v165 = vunpack.c.l.b16 %v127
    %v166 = vunpack.c.l.b16 %v128
    %v167 = vunpack.c.l.b16 %v129
    %v168 = vunpack.c.l.b16 %v130
    %v169 = vunpack.c.l.b16 %v131
    %v170 = vunpack.c.l.b16 %v132
    %v171 = vunpack.c.l.b16 %v133
    %v172 = vpack.c.b16 %v157, %v156
    %v173 = vpack.c.b16 %v159, %v158
    %v174 = vpack.c.b16 %v161, %v160
    %v175 = vpack.c.b16 %v163, %v162
    %v176 = vpack.c.b16 %v165, %v164
    %v177 = vpack.c.b16 %v167, %v166
    %v178 = vpack.c.b16 %v169, %v168
    %v179 = vpack.c.b16 %v171, %v170
    %188 = vmatpush.bf16.msra.mxu0 %v179
    %189 = vmatpush.bf16.msra.mxu0 %v178
    %190 = vmatpush.bf16.msra.mxu0 %v177
    %191 = vmatpush.bf16.msra.mxu0 %v176
    %192 = vmatpush.bf16.msra.mxu0 %v175
    %193 = vmatpush.bf16.msra.mxu0 %v174
    %194 = vmatpush.bf16.msra.mxu0 %v173
    %195 = vmatpush.bf16.msra.mxu0 %v172
    %196 = vmatmul.bf16.gmra.mxu0 %v136
    %v197 = vpop.f32.mrf.mxu0
    %v198 = vadd.f32 %v138, %v197
    %v199 = vpop.f32.mrf.mxu0
    %v200 = vadd.f32 %v138, %v199
    %201 = vdwg.mxu0
    %v202 = vtanh.pop %v198
    %v203 = vtanh.pop %v200
    %s204 = scalar_lea.vmem [#allocation2], 128
    %v205 = vld [vmem:[%s204] sm:$0xf]
    %v206 = vld [vmem:[%s204 + $0x4] sm:$0xf]
    %v207 = vld [vmem:[%s204 + $0x8] sm:$0xf]
    %v208 = vld [vmem:[%s204 + $0xc] sm:$0xf]
    %v209 = vld [vmem:[%s204 + $0x10] sm:$0xf]
    %v210 = vld [vmem:[%s204 + $0x14] sm:$0xf]
    %v211 = vld [vmem:[%s204 + $0x18] sm:$0xf]
    %v212 = vld [vmem:[%s204 + $0x1c] sm:$0xf]
    %v213 = vld [vmem:[%s204 + $0x20] sm:$0xf]
    %v214 = vld [vmem:[%s204 + $0x24] sm:$0xf]
    %v215 = vld [vmem:[%s204 + $0x28] sm:$0xf]
    %v216 = vld [vmem:[%s204 + $0x2c] sm:$0xf]
    %v217 = vld [vmem:[%s204 + $0x30] sm:$0xf]
    %v218 = vld [vmem:[%s204 + $0x34] sm:$0xf]
    %v219 = vld [vmem:[%s204 + $0x38] sm:$0xf]
    %v220 = vld [vmem:[%s204 + $0x3c] sm:$0xf]
    %s221 = scalar_lea.vmem %s2, 2
    %v222 = vld [vmem:[%s221] sm:$0x1]
    %v223 = vpack.c.bf16 %v203, %v202
    %v225 = vperm.slane %v222, 0
    %v243 = vunpack.c.l.b16 %v205
    %v244 = vunpack.c.l.b16 %v206
    %v245 = vunpack.c.l.b16 %v207
    %v246 = vunpack.c.l.b16 %v208
    %v247 = vunpack.c.l.b16 %v209
    %v248 = vunpack.c.l.b16 %v210
    %v249 = vunpack.c.l.b16 %v211
    %v250 = vunpack.c.l.b16 %v212
    %v251 = vunpack.c.l.b16 %v213
    %v252 = vunpack.c.l.b16 %v214
    %v253 = vunpack.c.l.b16 %v215
    %v254 = vunpack.c.l.b16 %v216
    %v255 = vunpack.c.l.b16 %v217
    %v256 = vunpack.c.l.b16 %v218
    %v257 = vunpack.c.l.b16 %v219
    %v258 = vunpack.c.l.b16 %v220
    %v259 = vpack.c.b16 %v244, %v243
    %v260 = vpack.c.b16 %v246, %v245
    %v261 = vpack.c.b16 %v248, %v247
    %v262 = vpack.c.b16 %v250, %v249
    %v263 = vpack.c.b16 %v252, %v251
    %v264 = vpack.c.b16 %v254, %v253
    %v265 = vpack.c.b16 %v256, %v255
    %v266 = vpack.c.b16 %v258, %v257
    %275 = vmatpush.bf16.msra.mxu0 %v266
    %276 = vmatpush.bf16.msra.mxu0 %v265
    %277 = vmatpush.bf16.msra.mxu0 %v264
    %278 = vmatpush.bf16.msra.mxu0 %v263
    %279 = vmatpush.bf16.msra.mxu0 %v262
    %280 = vmatpush.bf16.msra.mxu0 %v261
    %281 = vmatpush.bf16.msra.mxu0 %v260
    %282 = vmatpush.bf16.msra.mxu0 %v259
    %283 = vmatmul.bf16.gmra.mxu0 %v223
    %v284 = vpop.f32.mrf.mxu0
    %v285 = vadd.f32 %v225, %v284
    %v286 = vpop.f32.mrf.mxu0
    %v287 = vadd.f32 %v225, %v286
    %288 = vdwg.mxu0
    %v289 = vtanh.pop %v285
    %v290 = vtanh.pop %v287
    %s291 = scalar_lea.vmem [#allocation2], 192
    %v292 = vld [vmem:[%s291] sm:$0xf]
    %v293 = vld [vmem:[%s291 + $0x4] sm:$0xf]
    %v294 = vld [vmem:[%s291 + $0x8] sm:$0xf]
    %v295 = vld [vmem:[%s291 + $0xc] sm:$0xf]
    %v296 = vld [vmem:[%s291 + $0x10] sm:$0xf]
    %v297 = vld [vmem:[%s291 + $0x14] sm:$0xf]
    %v298 = vld [vmem:[%s291 + $0x18] sm:$0xf]
    %v299 = vld [vmem:[%s291 + $0x1c] sm:$0xf]
    %v300 = vld [vmem:[%s291 + $0x20] sm:$0xf]
    %v301 = vld [vmem:[%s291 + $0x24] sm:$0xf]
    %v302 = vld [vmem:[%s291 + $0x28] sm:$0xf]
    %v303 = vld [vmem:[%s291 + $0x2c] sm:$0xf]
    %v304 = vld [vmem:[%s291 + $0x30] sm:$0xf]
    %v305 = vld [vmem:[%s291 + $0x34] sm:$0xf]
    %v306 = vld [vmem:[%s291 + $0x38] sm:$0xf]
    %v307 = vld [vmem:[%s291 + $0x3c] sm:$0xf]
    %s308 = scalar_lea.vmem %s2, 3
    %v309 = vld [vmem:[%s308] sm:$0x1]
    %v310 = vpack.c.bf16 %v290, %v289
    %v312 = vperm.slane %v309, 0
    %v330 = vunpack.c.l.b16 %v292
    %v331 = vunpack.c.l.b16 %v293
    %v332 = vunpack.c.l.b16 %v294
    %v333 = vunpack.c.l.b16 %v295
    %v334 = vunpack.c.l.b16 %v296
    %v335 = vunpack.c.l.b16 %v297
    %v336 = vunpack.c.l.b16 %v298
    %v337 = vunpack.c.l.b16 %v299
    %v338 = vunpack.c.l.b16 %v300
    %v339 = vunpack.c.l.b16 %v301
    %v340 = vunpack.c.l.b16 %v302
    %v341 = vunpack.c.l.b16 %v303
    %v342 = vunpack.c.l.b16 %v304
    %v343 = vunpack.c.l.b16 %v305
    %v344 = vunpack.c.l.b16 %v306
    %v345 = vunpack.c.l.b16 %v307
    %v346 = vpack.c.b16 %v331, %v330
    %v347 = vpack.c.b16 %v333, %v332
    %v348 = vpack.c.b16 %v335, %v334
    %v349 = vpack.c.b16 %v337, %v336
    %v350 = vpack.c.b16 %v339, %v338
    %v351 = vpack.c.b16 %v341, %v340
    %v352 = vpack.c.b16 %v343, %v342
    %v353 = vpack.c.b16 %v345, %v344
    %362 = vmatpush.bf16.msra.mxu0 %v353
    %363 = vmatpush.bf16.msra.mxu0 %v352
    %364 = vmatpush.bf16.msra.mxu0 %v351
    %365 = vmatpush.bf16.msra.mxu0 %v350
    %366 = vmatpush.bf16.msra.mxu0 %v349
    %367 = vmatpush.bf16.msra.mxu0 %v348
    %368 = vmatpush.bf16.msra.mxu0 %v347
    %369 = vmatpush.bf16.msra.mxu0 %v346
    %370 = vmatmul.bf16.gmra.mxu0 %v310
    %v371 = vpop.f32.mrf.mxu0
    %v372 = vadd.f32 %v312, %v371
    %v373 = vpop.f32.mrf.mxu0
    %v374 = vadd.f32 %v312, %v373
    %375 = vdwg.mxu0
    %376 = vst [vmem:[%s3] sm:$0xff] %v372
    %377 = vst [vmem:[%s3 + $0x8] sm:$0xff] %v374
    // Predicated region
    $region18: #{fnn_forward.1} parent=1 // pred_check
      _
    $region19: #{fnn_forward.1} parent=1 // pred_check_branch
      %379 = sbr.rel (0) target = $region21
    $region20: #{fnn_forward.1} parent=1 // pred_region
      _
    $region21: #{fnn_forward.1} parent=1 // pred_fallthru
      _
    // Predicated region
    $region22: #{fnn_forward.1} parent=1 // pred_check
      _
    $region23: #{fnn_forward.1} parent=1 // pred_check_branch
      %381 = sbr.rel (0) target = $region25
    $region24: #{fnn_forward.1} parent=1 // pred_region
      _
    $region25: #{fnn_forward.1} parent=1 // pred_fallthru
      _
    %382 = vsyncpa [#allocation3], 1

</llo_original>
